<compile_context>
chip_gen: v7x
topology: tpu7x:2x2x1
jax: 0.10.0
libtpu: 0.0.40
codegen_flags: <defaults>
</compile_context>

<pallas_src>
import jax
import jax.numpy as jnp
from jax.experimental import pallas as pl
from jax.experimental.pallas import tpu as pltpu

# per-layer scalar packing (d_model = dim_feedforward = 1 -> every encoder
# parameter is a scalar):
# [wq, wk, wv, bq, bk, bv, w_out, b_out, n1_w, n1_b,
#  w_lin1, b_lin1, w_lin2, b_lin2, n2_w, n2_b]
_N_SCAL = 16
_LANE = 128
_SUBLANE = 8
_LN_EPS = 1e-5


def _round_up(a: int, b: int) -> int:
    return ((a + b - 1) // b) * b


def _pad2d(a, rows, cols):
    out = jnp.zeros((rows, cols), a.dtype)
    return out.at[: a.shape[0], : a.shape[1]].set(a)


# --------------------------------------------------------------------------- #
# Kernel
# --------------------------------------------------------------------------- #
def feature_transformer_kernel(scal_ref, w1t_ref, b1_ref, w2t_ref, b2_ref, out_ref):
    # Encoder output == constant broadcast of the LAST layer's norm2 bias
    # (last element of the flat scalar pack).  Exact algebra -- see header.
    const = scal_ref[scal_ref.shape[0] - 1]

    tm = out_ref.shape[0]
    n_pad = w1t_ref.shape[0]

    # bf16 MXU operands, f32 accumulation.  Padded rows/cols of the weights
    # are zero, so the padded lanes of `h` / `o1` contribute nothing.
    h = jnp.full((tm, n_pad), const, dtype=w1t_ref.dtype)

    o1 = jnp.dot(h, w1t_ref[...], preferred_element_type=jnp.float32) + b1_ref[...]
    o1 = jnp.maximum(o1, 0.0)
    out_ref[...] = (
        jnp.dot(o1.astype(w2t_ref.dtype), w2t_ref[...],
                preferred_element_type=jnp.float32)
        + b2_ref[...]
    )


# --------------------------------------------------------------------------- #
# Host-side wrappers
# --------------------------------------------------------------------------- #
def prepare_params(params):
    """One-time prep: flatten scalars, transpose / zero-pad / bf16-cast fc weights."""
    scal = jnp.reshape(params["layer_scalars"].astype(jnp.float32), (-1,))  # (L*16,)

    w1 = params["fc1_w"]            # (h_feats, in_feats)  -- PyTorch layout
    b1 = params["fc1_b"]            # (h_feats,)
    w2 = params["fc2_w"]            # (num_classes, h_feats)
    b2 = params["fc2_b"]            # (num_classes,)

    h_feats, in_feats = w1.shape
    num_classes = w2.shape[0]

    n_pad = _round_up(in_feats, _LANE)
    h_pad = _round_up(h_feats, _LANE)
    c_pad = _round_up(num_classes, _LANE)

    w1t = _pad2d(jnp.transpose(w1), n_pad, h_pad).astype(jnp.bfloat16)  # (n_pad, h_pad)
    w2t = _pad2d(jnp.transpose(w2), h_pad, c_pad).astype(jnp.bfloat16)  # (h_pad, c_pad)
    b1p = _pad2d(b1[None, :].astype(jnp.float32), 1, h_pad)             # (1, h_pad)
    b2p = _pad2d(b2[None, :].astype(jnp.float32), 1, c_pad)             # (1, c_pad)

    return {
        "scal": scal, "w1t": w1t, "b1": b1p, "w2t": w2t, "b2": b2p,
        "num_classes": num_classes,
    }


def feature_transformer_forward(x, prepared, *, tm=512):
    """Forward pass.  `x` participates only through its shape: the encoder
    output is provably independent of the input values (see header)."""
    m, _ = x.shape
    scal = prepared["scal"]
    w1t, b1 = prepared["w1t"], prepared["b1"]
    w2t, b2 = prepared["w2t"], prepared["b2"]
    num_classes = prepared["num_classes"]

    n_pad, h_pad = w1t.shape
    c_pad = w2t.shape[1]

    tm = min(tm, _round_up(m, _SUBLANE))
    m_pad = _round_up(m, tm)
    grid = (m_pad // tm,)

    grid_spec = pltpu.PrefetchScalarGridSpec(
        num_scalar_prefetch=1,                                    # scal -> SMEM
        grid=grid,
        in_specs=[
            pl.BlockSpec((n_pad, h_pad), lambda i, _s: (0, 0)),   # fc1 weight^T
            pl.BlockSpec((1, h_pad), lambda i, _s: (0, 0)),       # fc1 bias
            pl.BlockSpec((h_pad, c_pad), lambda i, _s: (0, 0)),   # fc2 weight^T
            pl.BlockSpec((1, c_pad), lambda i, _s: (0, 0)),       # fc2 bias
        ],
        out_specs=pl.BlockSpec((tm, c_pad), lambda i, _s: (i, 0)),
    )

    out_padded = pl.pallas_call(
        feature_transformer_kernel,
        out_shape=jax.ShapeDtypeStruct((m_pad, c_pad), jnp.float32),
        grid_spec=grid_spec,
        compiler_params=pltpu.CompilerParams(
            dimension_semantics=("parallel",),       # megacore-shard batch on v7x
            vmem_limit_bytes=32 * 1024 * 1024,
        ),
    )(scal, w1t, b1, w2t, b2)

    return out_padded[:m, :num_classes]


# --------------------------------------------------------------------------- #
# Literal pure-JAX reference (full attention / softmax / LayerNorm / FFN path)
# used to verify the algebraic simplification inside the kernel.
# --------------------------------------------------------------------------- #
def _reference_forward(x, params):
    scal = params["layer_scalars"].astype(jnp.float32)   # (L, 16)
    h = x.astype(jnp.float32)                             # (m, n), d_model=1 squeezed
    for l in range(scal.shape[0]):
        (wq, wk, wv, bq, bk, bv, wo, bo, n1w, n1b,
         wl1, bl1, wl2, bl2, n2w, n2b) = [scal[l, i] for i in range(_N_SCAL)]
        q = h * wq + bq
        k = h * wk + bk
        v = h * wv + bv
        s = q[:, :, None] * k[:, None, :]                 # (m, n, n), scale = 1
        p = jax.nn.softmax(s, axis=-1)
        attn = jnp.sum(p * v[:, None, :], axis=-1) * wo + bo
        y = h + attn
        y = (y - y) / jnp.sqrt(_LN_EPS) * n1w + n1b       # LayerNorm over size-1 axis
        ff = jnp.maximum(y * wl1 + bl1, 0.0) * wl2 + bl2
        z = y + ff
        h = (z - z) / jnp.sqrt(_LN_EPS) * n2w + n2b
    o1 = jnp.maximum(h @ params["fc1_w"].T + params["fc1_b"], 0.0)
    return o1 @ params["fc2_w"].T + params["fc2_b"]


# --------------------------------------------------------------------------- #
# Param init (PyTorch-style layouts)
# --------------------------------------------------------------------------- #
def init_params(key, in_feats, h_feats, num_classes, num_layers=2):
    keys = jax.random.split(key, 4 + num_layers)
    layers = []
    for l in range(num_layers):
        vals = jax.random.normal(keys[l], (_N_SCAL,), dtype=jnp.float32) * 0.1
        # LayerNorm weights -> 1.0 (PyTorch default); random small biases.
        vals = vals.at[8].set(1.0).at[14].set(1.0)
        layers.append(vals)
    layer_scalars = jnp.stack(layers, axis=0)             # (num_layers, 16)

    fc1_w = jax.random.normal(keys[num_layers + 0], (h_feats, in_feats), jnp.float32) * 0.1
    fc1_b = jax.random.normal(keys[num_layers + 1], (h_feats,), jnp.float32) * 0.1
    fc2_w = jax.random.normal(keys[num_layers + 2], (num_classes, h_feats), jnp.float32) * 0.1
    fc2_b = jax.random.normal(keys[num_layers + 3], (num_classes,), jnp.float32) * 0.1
    return {
        "layer_scalars": layer_scalars,
        "fc1_w": fc1_w, "fc1_b": fc1_b,
        "fc2_w": fc2_w, "fc2_b": fc2_b,
    }


if __name__ == "__main__":
    # small shapes consistent with the module:
    #   in_feats = 16, num_heads = 1 (d_model=1 forces it), h_feats = 32, num_classes = 4
    m, in_feats, h_feats, num_classes = 8, 16, 32, 4

    key = jax.random.PRNGKey(0)
    kx, kp = jax.random.split(key)
    x = jax.random.normal(kx, (m, in_feats), dtype=jnp.float32)
    params = init_params(kp, in_feats, h_feats, num_classes)
    prepared = prepare_params(params)

    out = feature_transformer_forward(x, prepared)
    out = jax.block_until_ready(out)
    assert out.shape == (m, num_classes) and out.dtype == jnp.float32

    # Check against the literal (attention + softmax + LayerNorm + FFN) reference.
    ref = jax.block_until_ready(_reference_forward(x, params))
    assert jnp.allclose(out, ref, atol=1e-2, rtol=1e-2), (out, ref)

    print("KERNEL_OK")
</pallas_src>

<mosaic_0001>
module attributes {stable_mosaic.version = 11 : i64} {
  func.func @feature_transformer_kernel(%arg0: i32, %arg1: memref<32xf32, #tpu.memory_space<smem>>, %arg2: memref<128x128xbf16, #tpu.memory_space<vmem>>, %arg3: memref<1x128xf32, #tpu.memory_space<vmem>>, %arg4: memref<128x128xbf16, #tpu.memory_space<vmem>>, %arg5: memref<1x128xf32, #tpu.memory_space<vmem>>, %arg6: memref<8x128xf32, #tpu.memory_space<vmem>>) attributes {dimension_semantics = [#tpu.dimension_semantics<parallel>], iteration_bounds = array<i64: 1>, scalar_prefetch = 1 : i64, scratch_operands = 0 : i64, tpu.core_type = #tpu.core_type<tc>, window_params = [{pipeline_mode = #tpu.pipeline_mode<synchronous>, transform_indices = @transform_0, window_bounds = array<i64: 128, 128>}, {pipeline_mode = #tpu.pipeline_mode<synchronous>, transform_indices = @transform_1, window_bounds = array<i64: 1, 128>}, {pipeline_mode = #tpu.pipeline_mode<synchronous>, transform_indices = @transform_2, window_bounds = array<i64: 128, 128>}, {pipeline_mode = #tpu.pipeline_mode<synchronous>, transform_indices = @transform_3, window_bounds = array<i64: 1, 128>}, {transform_indices = @transform_4, window_bounds = array<i64: 8, 128>}]} {
    %c31 = arith.constant 31 : index
    %0 = memref.load %arg1[%c31] : memref<32xf32, #tpu.memory_space<smem>>
    %1 = arith.truncf %0 : f32 to bf16
    %2 = vector.broadcast %1 : bf16 to vector<8x128xbf16>
    %c0 = arith.constant 0 : index
    %c0_0 = arith.constant 0 : index
    %3 = vector.load %arg2[%c0, %c0_0] : memref<128x128xbf16, #tpu.memory_space<vmem>>, vector<128x128xbf16>
    %cst = arith.constant dense<0.000000e+00> : vector<8x128xf32>
    %4 = tpu.matmul %2, %3, %cst {dimension_numbers = #tpu.dot_dimension_numbers<[1], [0], [0], [1], [0, 0, 1, 1], [], []>} : vector<8x128xbf16>, vector<128x128xbf16>, vector<8x128xf32> -> vector<8x128xf32>
    %c0_1 = arith.constant 0 : index
    %c0_2 = arith.constant 0 : index
    %5 = vector.load %arg3[%c0_1, %c0_2] : memref<1x128xf32, #tpu.memory_space<vmem>>, vector<1x128xf32>
    %6 = vector.broadcast %5 : vector<1x128xf32> to vector<8x128xf32>
    %7 = arith.addf %4, %6 : vector<8x128xf32>
    %cst_3 = arith.constant 0.000000e+00 : f32
    %8 = vector.broadcast %cst_3 : f32 to vector<8x128xf32>
    %9 = arith.maximumf %7, %8 : vector<8x128xf32>
    %10 = arith.truncf %9 : vector<8x128xf32> to vector<8x128xbf16>
    %c0_4 = arith.constant 0 : index
    %c0_5 = arith.constant 0 : index
    %11 = vector.load %arg4[%c0_4, %c0_5] : memref<128x128xbf16, #tpu.memory_space<vmem>>, vector<128x128xbf16>
    %cst_6 = arith.constant dense<0.000000e+00> : vector<8x128xf32>
    %12 = tpu.matmul %10, %11, %cst_6 {dimension_numbers = #tpu.dot_dimension_numbers<[1], [0], [0], [1], [0, 0, 1, 1], [], []>} : vector<8x128xbf16>, vector<128x128xbf16>, vector<8x128xf32> -> vector<8x128xf32>
    %c0_7 = arith.constant 0 : index
    %c0_8 = arith.constant 0 : index
    %13 = vector.load %arg5[%c0_7, %c0_8] : memref<1x128xf32, #tpu.memory_space<vmem>>, vector<1x128xf32>
    %14 = vector.broadcast %13 : vector<1x128xf32> to vector<8x128xf32>
    %15 = arith.addf %12, %14 : vector<8x128xf32>
    %c0_9 = arith.constant 0 : index
    %c0_10 = arith.constant 0 : index
    %16 = vector.load %arg6[%c0_9, %c0_10] : memref<8x128xf32, #tpu.memory_space<vmem>>, vector<8x128xf32>
    tpu.vector_store %arg6[%c0_9, %c0_10], %15 {strides = array<i32>} : memref<8x128xf32, #tpu.memory_space<vmem>>, vector<8x128xf32>,
    return
  }
  func.func @transform_0(%arg0: i32, %arg1: memref<32xf32, #tpu.memory_space<smem>>) -> (i32, i32) {
    %c0_i32 = arith.constant 0 : i32
    %c0_i32_0 = arith.constant 0 : i32
    %c0_i32_1 = arith.constant 0 : i32
    return %c0_i32, %c0_i32_0 : i32, i32
  }
  func.func @transform_1(%arg0: i32, %arg1: memref<32xf32, #tpu.memory_space<smem>>) -> (i32, i32) {
    %c0_i32 = arith.constant 0 : i32
    %c0_i32_0 = arith.constant 0 : i32
    %c0_i32_1 = arith.constant 0 : i32
    return %c0_i32, %c0_i32_0 : i32, i32
  }
  func.func @transform_2(%arg0: i32, %arg1: memref<32xf32, #tpu.memory_space<smem>>) -> (i32, i32) {
    %c0_i32 = arith.constant 0 : i32
    %c0_i32_0 = arith.constant 0 : i32
    %c0_i32_1 = arith.constant 0 : i32
    return %c0_i32, %c0_i32_0 : i32, i32
  }
  func.func @transform_3(%arg0: i32, %arg1: memref<32xf32, #tpu.memory_space<smem>>) -> (i32, i32) {
    %c0_i32 = arith.constant 0 : i32
    %c0_i32_0 = arith.constant 0 : i32
    %c0_i32_1 = arith.constant 0 : i32
    return %c0_i32, %c0_i32_0 : i32, i32
  }
  func.func @transform_4(%arg0: i32, %arg1: memref<32xf32, #tpu.memory_space<smem>>) -> (i32, i32) {
    %c0_i32 = arith.constant 0 : i32
    %c0_i32_0 = arith.constant 0 : i32
    return %arg0, %c0_i32 : i32, i32
  }
}

</mosaic_0001>

<llo_original>
// kernel: tpu_custom_call.1
$region0: #{tpu_custom_call.1}
  #allocation0 [shape = 'u32[]', space=smem, size = 0x4, offset = 0x4, fixed_abs, tag = 'smem constant byte address 0x4 - core index']
  #allocation1 [shape = 'u32[144,128]{1,0:T(1,128)}', space=vmem, size = 0x12000, scoped, tag = 'internal scratch']
  #allocation2 [shape = 's32[1]{0}', space=sflag, size = 0x4, scoped, tag = 'scoped memory for tpu_custom_call.1']
  #allocation3 [shape = 'u8[512]{0}', space=smem, size = 0x200, scoped, tag = 'prefetched SMEM operand 0']
  %s0 = inlined_call_operand.hbm [shape: f32[32], index: 0, kind: input, shape index: {}]
  %s1 = inlined_call_operand.hbm [shape: bf16[128,128], index: 1, kind: input, shape index: {}]
  %s2 = inlined_call_operand.vmem [shape: f32[1,128], index: 2, kind: input, shape index: {}]
  %s3 = inlined_call_operand.hbm [shape: bf16[128,128], index: 3, kind: input, shape index: {}]
  %s4 = inlined_call_operand.vmem [shape: f32[1,128], index: 4, kind: input, shape index: {}]
  %s5 = inlined_call_operand.hbm [shape: f32[8,128], index: 5, kind: output, shape index: {}]
  %s6 = sld [smem:[#allocation0]]
  $region34: #{tpu_custom_call.1} parent=0
    _
  %s8 = ssub.s32 1, %s6
  %s9 = scalar_select 0, %s8, %s6
  %11 = dma.hbm_to_smem %s0, 16, [#allocation3], [#allocation2]
  %12 = dma.done [#allocation2], 16
  %13 = sfence
  $region1: #{tpu_custom_call.1} parent=0
    #allocation4 [shape = 'u8[32768]{0}', space=vmem, size = 0x8000, scoped, tag = 'input window, operand 1, single buffered']
    #allocation5 [shape = 's32[1]{0}', space=sflag, size = 0x4, scoped, tag = 'scoped memory for tpu_custom_call.1']
    #allocation6 [shape = 's32[1]{0}', space=sflag, size = 0x4, scoped, tag = 'scoped memory for tpu_custom_call.1']
    #allocation7 [shape = 'u8[32768]{0}', space=vmem, size = 0x8000, scoped, tag = 'input window, operand 3, single buffered']
    #allocation8 [shape = 's32[1]{0}', space=sflag, size = 0x4, scoped, tag = 'scoped memory for tpu_custom_call.1']
    #allocation9 [shape = 'u8[4096]{0}', space=vmem, size = 0x1000, scoped, tag = 'output window, operand 0, single buffered']
    %14 = vsyncpa [#allocation5], 0
    %15 = vsyncpa [#allocation8], 0
    %16 = vsyncpa [#allocation6], 0
    // Predicated region
    $region2: #{tpu_custom_call.1} parent=1 // pred_check
      _
    $region3: #{tpu_custom_call.1} parent=1 // pred_check_branch
      %18 = sbr.rel (0) target = $region5
    $region4: #{tpu_custom_call.1} parent=1 // pred_region
      %s20 = ssub.s32 1024, 1024
      %21 = vsyncadd [#allocation5], %s20
      %s22 = sshll.u32 [#allocation4], 4
      %s23 = int_to_ptr.vmem [resolvable:$true] %s22
      %28 = dma.hbm_to_vmem [thread:$0]  %s1, 1024, %s23, [#allocation5], 64, 64, 4
    $region5: #{tpu_custom_call.1} parent=1 // pred_fallthru
      _
    // Predicated region
    $region6: #{tpu_custom_call.1} parent=1 // pred_check
      _
    $region7: #{tpu_custom_call.1} parent=1 // pred_check_branch
      %30 = sbr.rel (0) target = $region9
    $region8: #{tpu_custom_call.1} parent=1 // pred_region
      _
    $region9: #{tpu_custom_call.1} parent=1 // pred_fallthru
      _
    // Predicated region
    $region10: #{tpu_custom_call.1} parent=1 // pred_check
      _
    $region11: #{tpu_custom_call.1} parent=1 // pred_check_branch
      %32 = sbr.rel (0) target = $region13
    $region12: #{tpu_custom_call.1} parent=1 // pred_region
      %s34 = ssub.s32 1024, 1024
      %35 = vsyncadd [#allocation8], %s34
      %s36 = sshll.u32 [#allocation7], 4
      %s37 = int_to_ptr.vmem [resolvable:$true] %s36
      %42 = dma.hbm_to_vmem [thread:$0]  %s3, 1024, %s37, [#allocation8], 64, 64, 4
    $region13: #{tpu_custom_call.1} parent=1 // pred_fallthru
      _
    // Predicated region
    $region14: #{tpu_custom_call.1} parent=1 // pred_check
      _
    $region15: #{tpu_custom_call.1} parent=1 // pred_check_branch
      %44 = sbr.rel (0) target = $region17
    $region16: #{tpu_custom_call.1} parent=1 // pred_region
      _
    $region17: #{tpu_custom_call.1} parent=1 // pred_fallthru
      _
    // Predicated region
    $region18: #{tpu_custom_call.1} parent=1 // pred_check
      _
    $region19: #{tpu_custom_call.1} parent=1 // pred_check_branch
      %46 = sbr.rel (0) target = $region21
    $region20: #{tpu_custom_call.1} parent=1 // pred_region
      %47 = dma.done [#allocation5], 1024
    $region21: #{tpu_custom_call.1} parent=1 // pred_fallthru
      _
    // Predicated region
    $region22: #{tpu_custom_call.1} parent=1 // pred_check
      _
    $region23: #{tpu_custom_call.1} parent=1 // pred_check_branch
      %49 = sbr.rel (0) target = $region25
    $region24: #{tpu_custom_call.1} parent=1 // pred_region
      %50 = dma.done [#allocation8], 1024
    $region25: #{tpu_custom_call.1} parent=1 // pred_fallthru
      _
    %s52 = sld [smem:[#allocation3 + $0x1f]]
    %p54 = scmp.ne.f32.partialorder %s52, %s52
    %s55 = sshrl.u32 %s52, 16
    %s56 = sand.u32 %s55, 1
    %s57 = sadd.s32 32767, %s56
    %s58 = sadd.s32 %s52, %s57
    %s59 = sand.u32 %s58, 4294901760
    %s60 = scalar_select %p54, 2143289344, %s59
    %s62 = sshrl.u32 %s60, 16
    %s63 = sshll.u32 %s62, 16
    %s64 = sor.u32 %s62, %s63
    %v65 = vstv %s64
    %v67 = vld [vmem:[#allocation4] sm:$0xf]
    %v68 = vld [vmem:[#allocation4 + $0x4] sm:$0xf]
    %v69 = vld [vmem:[#allocation4 + $0x8] sm:$0xf]
    %v70 = vld [vmem:[#allocation4 + $0xc] sm:$0xf]
    %v71 = vld [vmem:[#allocation4 + $0x10] sm:$0xf]
    %v72 = vld [vmem:[#allocation4 + $0x14] sm:$0xf]
    %v73 = vld [vmem:[#allocation4 + $0x18] sm:$0xf]
    %v74 = vld [vmem:[#allocation4 + $0x1c] sm:$0xf]
    %v75 = vld [vmem:[#allocation4 + $0x20] sm:$0xf]
    %v76 = vld [vmem:[#allocation4 + $0x24] sm:$0xf]
    %v77 = vld [vmem:[#allocation4 + $0x28] sm:$0xf]
    %v78 = vld [vmem:[#allocation4 + $0x2c] sm:$0xf]
    %v79 = vld [vmem:[#allocation4 + $0x30] sm:$0xf]
    %v80 = vld [vmem:[#allocation4 + $0x34] sm:$0xf]
    %v81 = vld [vmem:[#allocation4 + $0x38] sm:$0xf]
    %v82 = vld [vmem:[#allocation4 + $0x3c] sm:$0xf]
    %v83 = vld [vmem:[%s2] sm:$0x1]
    %v85 = vlaneseq
    %v86 = vshrl.u32 %v85, 7
    %v87 = vsub.s32 0, %v86
    %v88 = vrot.slane %v83, %v87
    %v106 = vunpack.c.l.b16 %v67
    %v107 = vunpack.c.l.b16 %v68
    %v108 = vunpack.c.l.b16 %v69
    %v109 = vunpack.c.l.b16 %v70
    %v110 = vunpack.c.l.b16 %v71
    %v111 = vunpack.c.l.b16 %v72
    %v112 = vunpack.c.l.b16 %v73
    %v113 = vunpack.c.l.b16 %v74
    %v114 = vunpack.c.l.b16 %v75
    %v115 = vunpack.c.l.b16 %v76
    %v116 = vunpack.c.l.b16 %v77
    %v117 = vunpack.c.l.b16 %v78
    %v118 = vunpack.c.l.b16 %v79
    %v119 = vunpack.c.l.b16 %v80
    %v120 = vunpack.c.l.b16 %v81
    %v121 = vunpack.c.l.b16 %v82
    %v122 = vpack.c.b16 %v107, %v106
    %v123 = vpack.c.b16 %v109, %v108
    %v124 = vpack.c.b16 %v111, %v110
    %v125 = vpack.c.b16 %v113, %v112
    %v126 = vpack.c.b16 %v115, %v114
    %v127 = vpack.c.b16 %v117, %v116
    %v128 = vpack.c.b16 %v119, %v118
    %v129 = vpack.c.b16 %v121, %v120
    %138 = vmatprep.subr.bf16.mxu0 0
    %139 = vmatpush1.bf16.msra.mxu0 %v122
    %140 = vmatprep.subr.bf16.mxu0 0
    %141 = vmatpush1.bf16.msra.mxu0 %v123
    %142 = vmatprep.subr.bf16.mxu0 0
    %143 = vmatpush1.bf16.msra.mxu0 %v124
    %144 = vmatprep.subr.bf16.mxu0 0
    %145 = vmatpush1.bf16.msra.mxu0 %v125
    %146 = vmatprep.subr.bf16.mxu0 0
    %147 = vmatpush1.bf16.msra.mxu0 %v126
    %148 = vmatprep.subr.bf16.mxu0 0
    %149 = vmatpush1.bf16.msra.mxu0 %v127
    %150 = vmatprep.subr.bf16.mxu0 0
    %151 = vmatpush1.bf16.msra.mxu0 %v128
    %152 = vmatprep.subr.bf16.mxu0 0
    %153 = vmatpush1.bf16.msra.mxu0 %v129
    %154 = vmatprep.subr.bf16.mxu0 0
    %155 = vmatpush1.bf16.msra.mxu0 0
    %156 = vmatprep.subr.bf16.mxu0 0
    %157 = vmatpush1.bf16.msra.mxu0 0
    %158 = vmatprep.subr.bf16.mxu0 0
    %159 = vmatpush1.bf16.msra.mxu0 0
    %160 = vmatprep.subr.bf16.mxu0 0
    %161 = vmatpush1.bf16.msra.mxu0 0
    %162 = vmatprep.subr.bf16.mxu0 0
    %163 = vmatpush1.bf16.msra.mxu0 0
    %164 = vmatprep.subr.bf16.mxu0 0
    %165 = vmatpush1.bf16.msra.mxu0 0
    %166 = vmatprep.subr.bf16.mxu0 0
    %167 = vmatpush1.bf16.msra.mxu0 0
    %168 = vmatprep.subr.bf16.mxu0 0
    %169 = vmatpush1.bf16.msra.mxu0 0
    %170 = vmatprep.mubr.bf16.mxu0 0
    %171 = vmatmul.mubr.bf16.gmra.mrb[0].mxu0 %v65
    %v172 = vpop.f32.mrb[0].mxu0
    %v173 = vadd.f32 %v88, %v172
    %v174 = vpop.f32.mrb[0].mxu0
    %v175 = vpop.f32.mrb[0].mxu0
    %v176 = vpop.f32.mrb[0].mxu0
    %177 = vdwg.mxu0
    %v178 = vmax.f32 %v173, 0.0
    %v179 = vpack.c.bf16 %v178, %v178
    %v180 = vld [vmem:[#allocation7] sm:$0xf]
    %v181 = vld [vmem:[#allocation7 + $0x4] sm:$0xf]
    %v182 = vld [vmem:[#allocation7 + $0x8] sm:$0xf]
    %v183 = vld [vmem:[#allocation7 + $0xc] sm:$0xf]
    %v184 = vld [vmem:[#allocation7 + $0x10] sm:$0xf]
    %v185 = vld [vmem:[#allocation7 + $0x14] sm:$0xf]
    %v186 = vld [vmem:[#allocation7 + $0x18] sm:$0xf]
    %v187 = vld [vmem:[#allocation7 + $0x1c] sm:$0xf]
    %v188 = vld [vmem:[#allocation7 + $0x20] sm:$0xf]
    %v189 = vld [vmem:[#allocation7 + $0x24] sm:$0xf]
    %v190 = vld [vmem:[#allocation7 + $0x28] sm:$0xf]
    %v191 = vld [vmem:[#allocation7 + $0x2c] sm:$0xf]
    %v192 = vld [vmem:[#allocation7 + $0x30] sm:$0xf]
    %v193 = vld [vmem:[#allocation7 + $0x34] sm:$0xf]
    %v194 = vld [vmem:[#allocation7 + $0x38] sm:$0xf]
    %v195 = vld [vmem:[#allocation7 + $0x3c] sm:$0xf]
    %v196 = vld [vmem:[%s4] sm:$0x1]
    %v198 = vlaneseq
    %v199 = vshrl.u32 %v198, 7
    %v200 = vsub.s32 0, %v199
    %v201 = vrot.slane %v196, %v200
    %v219 = vunpack.c.l.b16 %v180
    %v220 = vunpack.c.l.b16 %v181
    %v221 = vunpack.c.l.b16 %v182
    %v222 = vunpack.c.l.b16 %v183
    %v223 = vunpack.c.l.b16 %v184
    %v224 = vunpack.c.l.b16 %v185
    %v225 = vunpack.c.l.b16 %v186
    %v226 = vunpack.c.l.b16 %v187
    %v227 = vunpack.c.l.b16 %v188
    %v228 = vunpack.c.l.b16 %v189
    %v229 = vunpack.c.l.b16 %v190
    %v230 = vunpack.c.l.b16 %v191
    %v231 = vunpack.c.l.b16 %v192
    %v232 = vunpack.c.l.b16 %v193
    %v233 = vunpack.c.l.b16 %v194
    %v234 = vunpack.c.l.b16 %v195
    %v235 = vpack.c.b16 %v220, %v219
    %v236 = vpack.c.b16 %v222, %v221
    %v237 = vpack.c.b16 %v224, %v223
    %v238 = vpack.c.b16 %v226, %v225
    %v239 = vpack.c.b16 %v228, %v227
    %v240 = vpack.c.b16 %v230, %v229
    %v241 = vpack.c.b16 %v232, %v231
    %v242 = vpack.c.b16 %v234, %v233
    %251 = vmatprep.subr.bf16.mxu0 0
    %252 = vmatpush1.bf16.msra.mxu0 %v235
    %253 = vmatprep.subr.bf16.mxu0 0
    %254 = vmatpush1.bf16.msra.mxu0 %v236
    %255 = vmatprep.subr.bf16.mxu0 0
    %256 = vmatpush1.bf16.msra.mxu0 %v237
    %257 = vmatprep.subr.bf16.mxu0 0
    %258 = vmatpush1.bf16.msra.mxu0 %v238
    %259 = vmatprep.subr.bf16.mxu0 0
    %260 = vmatpush1.bf16.msra.mxu0 %v239
    %261 = vmatprep.subr.bf16.mxu0 0
    %262 = vmatpush1.bf16.msra.mxu0 %v240
    %263 = vmatprep.subr.bf16.mxu0 0
    %264 = vmatpush1.bf16.msra.mxu0 %v241
    %265 = vmatprep.subr.bf16.mxu0 0
    %266 = vmatpush1.bf16.msra.mxu0 %v242
    %267 = vmatprep.subr.bf16.mxu0 0
    %268 = vmatpush1.bf16.msra.mxu0 0
    %269 = vmatprep.subr.bf16.mxu0 0
    %270 = vmatpush1.bf16.msra.mxu0 0
    %271 = vmatprep.subr.bf16.mxu0 0
    %272 = vmatpush1.bf16.msra.mxu0 0
    %273 = vmatprep.subr.bf16.mxu0 0
    %274 = vmatpush1.bf16.msra.mxu0 0
    %275 = vmatprep.subr.bf16.mxu0 0
    %276 = vmatpush1.bf16.msra.mxu0 0
    %277 = vmatprep.subr.bf16.mxu0 0
    %278 = vmatpush1.bf16.msra.mxu0 0
    %279 = vmatprep.subr.bf16.mxu0 0
    %280 = vmatpush1.bf16.msra.mxu0 0
    %281 = vmatprep.subr.bf16.mxu0 0
    %282 = vmatpush1.bf16.msra.mxu0 0
    %283 = vmatprep.mubr.bf16.mxu0 0
    %284 = vmatmul.mubr.bf16.gmra.mrb[0].mxu0 %v179
    %v285 = vpop.f32.mrb[0].mxu0
    %v286 = vadd.f32 %v201, %v285
    %v287 = vpop.f32.mrb[0].mxu0
    %v288 = vpop.f32.mrb[0].mxu0
    %v289 = vpop.f32.mrb[0].mxu0
    %290 = vdwg.mxu0
    %291 = vst [vmem:[#allocation9] sm:$0xff] %v286
    // Predicated region
    $region26: #{tpu_custom_call.1} parent=1 // pred_check
      _
    $region27: #{tpu_custom_call.1} parent=1 // pred_check_branch
      %293 = sbr.rel (0) target = $region29
    $region28: #{tpu_custom_call.1} parent=1 // pred_region
      %s295 = ssub.s32 128, 128
      %296 = vsyncadd [#allocation6], %s295
      %s298 = sshll.u32 [#allocation9], 4
      %s299 = int_to_ptr.vmem [resolvable:$true] %s298
      %301 = dma.vmem_to_hbm [thread:$0]  %s299, 128, %s5, [#allocation6]
    $region29: #{tpu_custom_call.1} parent=1 // pred_fallthru
      _
    // Predicated region
    $region30: #{tpu_custom_call.1} parent=1 // pred_check
      _
    $region31: #{tpu_custom_call.1} parent=1 // pred_check_branch
      %303 = sbr.rel (0) target = $region33
    $region32: #{tpu_custom_call.1} parent=1 // pred_region
      %304 = dma.done [#allocation6], 128
    $region33: #{tpu_custom_call.1} parent=1 // pred_fallthru
      _
    %305 = vsyncpa [#allocation5], 1
    %306 = vsyncpa [#allocation8], 1
    %307 = vsyncpa [#allocation6], 1

</llo_original>
